<compile_context>
chip_gen: v7x
topology: tpu7x:2x2x1
jax: 0.10.0
libtpu: 0.0.40
codegen_flags: <defaults>
</compile_context>

<pallas_src>
import functools

import jax
import jax.numpy as jnp
from jax import lax
from jax.experimental import pallas as pl
from jax.experimental.pallas import tpu as pltpu

# True-f32 matmuls (multi-pass MXU) so the Pallas kernels and the pure-JAX reference
# agree to ~1e-5 rather than single-pass-bf16 ~1e-3.
jax.config.update("jax_default_matmul_precision", "highest")

_LN_EPS = 1e-5


# ---------------------------------------------------------------------------
# small helpers
# ---------------------------------------------------------------------------
def _round_up(x, m):
    return (x + m - 1) // m * m


def _erf(x):
    # Abramowitz & Stegun 7.1.26 rational approximation (|err| <= 1.5e-7), built only
    # from ops that lower cleanly in Mosaic (abs / where / exp / mul / add / div).
    p = 0.3275911
    a1, a2, a3, a4, a5 = (0.254829592, -0.284496736, 1.421413741,
                          -1.453152027, 1.061405429)
    s = jnp.where(x < 0.0, -1.0, 1.0)
    ax = jnp.abs(x)
    t = 1.0 / (1.0 + p * ax)
    poly = ((((a5 * t + a4) * t + a3) * t + a2) * t + a1) * t
    return s * (1.0 - poly * jnp.exp(-ax * ax))


def _gelu_exact(x):
    # erf-based GELU (matches PyTorch nn.GELU default).
    return 0.5 * x * (1.0 + _erf(x * 0.7071067811865476))


# ---------------------------------------------------------------------------
# Tiled linear kernel: out = act(x @ w + b) [+ residual]
# ---------------------------------------------------------------------------
def _linear_kernel(*refs, has_bias, has_res, activation):
    x_ref, w_ref = refs[0], refs[1]
    idx = 2
    b_ref = None
    r_ref = None
    if has_bias:
        b_ref = refs[idx]
        idx += 1
    if has_res:
        r_ref = refs[idx]
        idx += 1
    o_ref = refs[idx]
    acc_ref = refs[idx + 1]

    k = pl.program_id(2)

    @pl.when(k == 0)
    def _():
        acc_ref[...] = jnp.zeros_like(acc_ref)

    acc_ref[...] += jnp.dot(x_ref[...], w_ref[...],
                            preferred_element_type=jnp.float32)

    @pl.when(k == pl.num_programs(2) - 1)
    def _():
        out = acc_ref[...]
        if has_bias:
            out = out + b_ref[...].astype(jnp.float32)
        if activation == "gelu":
            out = _gelu_exact(out)
        if has_res:
            out = out + r_ref[...].astype(jnp.float32)
        o_ref[...] = out.astype(o_ref.dtype)


def pallas_linear(x, w, bias=None, residual=None, activation=None,
                  tm=256, tn=256, tk=512):
    """out = activation(x @ w + bias) + residual, tiled over (M, N, K)."""
    M, K = x.shape
    Kw, N = w.shape
    assert K == Kw
    out_dtype = x.dtype

    # Pick tiles: the full dim when it is small (block == full dim satisfies the
    # (8,128) rule), otherwise a (8,128)-aligned tile with zero-padding.
    if M <= tm:
        tm_, Mp = M, M
    else:
        tm_, Mp = tm, _round_up(M, tm)
    if N <= tn:
        tn_, Np = N, N
    else:
        tn_, Np = tn, _round_up(N, tn)
    if K <= tk:
        tk_, Kp = K, K
    else:
        tk_, Kp = tk, _round_up(K, tk)

    xp = x if (Mp == M and Kp == K) else jnp.pad(x, ((0, Mp - M), (0, Kp - K)))
    wp = w if (Kp == K and Np == N) else jnp.pad(w, ((0, Kp - K), (0, Np - N)))

    has_bias = bias is not None
    has_res = residual is not None

    inputs = [xp, wp]
    in_specs = [
        pl.BlockSpec((tm_, tk_), lambda i, j, k: (i, k)),
        pl.BlockSpec((tk_, tn_), lambda i, j, k: (k, j)),
    ]
    if has_bias:
        bp = bias if Np == N else jnp.pad(bias, (0, Np - N))
        inputs.append(bp.reshape(1, Np))
        in_specs.append(pl.BlockSpec((1, tn_), lambda i, j, k: (0, j)))
    if has_res:
        rp = residual if (Mp == M and Np == N) else jnp.pad(
            residual, ((0, Mp - M), (0, Np - N)))
        inputs.append(rp)
        in_specs.append(pl.BlockSpec((tm_, tn_), lambda i, j, k: (i, j)))

    kernel = functools.partial(_linear_kernel, has_bias=has_bias,
                               has_res=has_res, activation=activation)
    # Per-block VMEM footprint (double-buffered) stays well under the default scoped
    # limit at these tile sizes, so vmem_limit_bytes is left at its default.
    out = pl.pallas_call(
        kernel,
        out_shape=jax.ShapeDtypeStruct((Mp, Np), out_dtype),
        grid=(Mp // tm_, Np // tn_, Kp // tk_),
        in_specs=in_specs,
        out_specs=pl.BlockSpec((tm_, tn_), lambda i, j, k: (i, j)),
        scratch_shapes=[pltpu.VMEM((tm_, tn_), jnp.float32)],
        compiler_params=pltpu.CompilerParams(
            dimension_semantics=("parallel", "parallel", "arbitrary")),
    )(*inputs)

    if (Mp, Np) != (M, N):
        out = out[:M, :N]
    return out


# ---------------------------------------------------------------------------
# LayerNorm kernel
# ---------------------------------------------------------------------------
def _layernorm_kernel(x_ref, g_ref, b_ref, o_ref, *, eps):
    x = x_ref[...].astype(jnp.float32)
    mu = jnp.mean(x, axis=-1, keepdims=True)
    xc = x - mu
    var = jnp.mean(xc * xc, axis=-1, keepdims=True)
    inv = lax.rsqrt(var + eps)
    o_ref[...] = (xc * inv * g_ref[...].astype(jnp.float32)
                  + b_ref[...].astype(jnp.float32)).astype(o_ref.dtype)


def pallas_layernorm(x, gamma, beta, eps=_LN_EPS, tr=256):
    B, N, C = x.shape
    M = B * N
    x2 = x.reshape(M, C)
    if M <= tr:
        tr_, Mp = M, M
    else:
        tr_, Mp = tr, _round_up(M, tr)
    xp = x2 if Mp == M else jnp.pad(x2, ((0, Mp - M), (0, 0)))

    out = pl.pallas_call(
        functools.partial(_layernorm_kernel, eps=eps),
        out_shape=jax.ShapeDtypeStruct((Mp, C), x.dtype),
        grid=(Mp // tr_,),
        in_specs=[
            pl.BlockSpec((tr_, C), lambda i: (i, 0)),
            pl.BlockSpec((1, C), lambda i: (0, 0)),
            pl.BlockSpec((1, C), lambda i: (0, 0)),
        ],
        out_specs=pl.BlockSpec((tr_, C), lambda i: (i, 0)),
        compiler_params=pltpu.CompilerParams(dimension_semantics=("parallel",)),
    )(xp, gamma.reshape(1, C), beta.reshape(1, C))

    if Mp != M:
        out = out[:M]
    return out.reshape(B, N, C)


# ---------------------------------------------------------------------------
# Attention kernels (one batch element per grid step, all heads on-chip)
# ---------------------------------------------------------------------------
def _softmax_rows(s):
    m = jnp.max(s, axis=-1, keepdims=True)
    e = jnp.exp(s - m)
    return e * pl.reciprocal(jnp.sum(e, axis=-1, keepdims=True), approx=True)


def _self_attn_kernel(qkv_ref, ctx_ref, *, num_heads, scale):
    qkv = qkv_ref[0].astype(jnp.float32)          # (N, 3C)
    C = qkv.shape[-1] // 3
    hd = C // num_heads
    ctx_parts = []
    for h in range(num_heads):                    # static, unrolled
        q = qkv[:, h * hd:(h + 1) * hd] * scale   # scale folded into q (O(N*hd))
        k = qkv[:, C + h * hd:C + (h + 1) * hd]
        v = qkv[:, 2 * C + h * hd:2 * C + (h + 1) * hd]
        s = lax.dot_general(q, k, (((1,), (1,)), ((), ())),
                            preferred_element_type=jnp.float32)   # q @ k^T, no k.T copy
        p = _softmax_rows(s)
        ctx_parts.append(jnp.dot(p, v, preferred_element_type=jnp.float32))
    # single lane-dense store of the merged heads (B, N, C layout, no HBM transpose)
    ctx_ref[0] = jnp.concatenate(ctx_parts, axis=-1).astype(ctx_ref.dtype)


def _cross_attn_kernel(q_ref, kv_ref, ctx_ref, w_ref, *, num_heads, scale):
    qh = q_ref[0].astype(jnp.float32)             # (Nq, C)
    kvh = kv_ref[0].astype(jnp.float32)           # (Nk, 2C) -> [k | v]
    C = qh.shape[-1]
    hd = C // num_heads
    ctx_parts = []
    for h in range(num_heads):
        q = qh[:, h * hd:(h + 1) * hd] * scale
        k = kvh[:, h * hd:(h + 1) * hd]
        v = kvh[:, C + h * hd:C + (h + 1) * hd]
        s = lax.dot_general(q, k, (((1,), (1,)), ((), ())),
                            preferred_element_type=jnp.float32)
        p = _softmax_rows(s)
        w_ref[0, h] = p.astype(w_ref.dtype)       # cross-attn weights are returned
        ctx_parts.append(jnp.dot(p, v, preferred_element_type=jnp.float32))
    ctx_ref[0] = jnp.concatenate(ctx_parts, axis=-1).astype(ctx_ref.dtype)


def pallas_self_attention(qkv, num_heads, scale):
    B, N, C3 = qkv.shape
    C = C3 // 3
    return pl.pallas_call(
        functools.partial(_self_attn_kernel, num_heads=num_heads, scale=scale),
        out_shape=jax.ShapeDtypeStruct((B, N, C), qkv.dtype),
        grid=(B,),
        in_specs=[pl.BlockSpec((1, N, C3), lambda b: (b, 0, 0))],
        out_specs=pl.BlockSpec((1, N, C), lambda b: (b, 0, 0)),
        compiler_params=pltpu.CompilerParams(dimension_semantics=("parallel",)),
    )(qkv)


def pallas_cross_attention(q_proj, kv_proj, num_heads, scale):
    B, Nq, C = q_proj.shape
    _, Nk, C2 = kv_proj.shape
    ctx, weights = pl.pallas_call(
        functools.partial(_cross_attn_kernel, num_heads=num_heads, scale=scale),
        out_shape=(jax.ShapeDtypeStruct((B, Nq, C), q_proj.dtype),
                   jax.ShapeDtypeStruct((B, num_heads, Nq, Nk), q_proj.dtype)),
        grid=(B,),
        in_specs=[
            pl.BlockSpec((1, Nq, C), lambda b: (b, 0, 0)),
            pl.BlockSpec((1, Nk, C2), lambda b: (b, 0, 0)),
        ],
        out_specs=(
            pl.BlockSpec((1, Nq, C), lambda b: (b, 0, 0)),
            pl.BlockSpec((1, num_heads, Nq, Nk), lambda b: (b, 0, 0, 0)),
        ),
        compiler_params=pltpu.CompilerParams(dimension_semantics=("parallel",)),
    )(q_proj, kv_proj)
    return ctx, weights


# ---------------------------------------------------------------------------
# Full SkipCrossAttention forward
# ---------------------------------------------------------------------------
def skip_cross_attention_forward(q, v, params, num_heads):
    B, Nq, C = q.shape
    _, Nk, Cv = v.shape
    out_dim = params["ca_proj_w"].shape[0]
    scale_self = (C // num_heads) ** -0.5
    scale_cross = (out_dim // num_heads) ** -0.5

    # ---- 1) self-attention branch: q = q + proj(self_attn(norm1(q))) ----
    nq1 = pallas_layernorm(q, params["norm1_w"], params["norm1_b"])
    qkv = pallas_linear(nq1.reshape(B * Nq, C), params["sa_qkv_w"])     # (B*Nq, 3C)
    ctx1 = pallas_self_attention(qkv.reshape(B, Nq, 3 * C), num_heads, scale_self)
    q = pallas_linear(ctx1.reshape(B * Nq, C), params["sa_proj_w"],
                      bias=params["sa_proj_b"],
                      residual=q.reshape(B * Nq, C)).reshape(B, Nq, C)

    # ---- 2) cross-attention branch: q = q + proj(cross_attn(norm_q(q), norm_v(v))) ----
    nq = pallas_layernorm(q, params["normq_w"], params["normq_b"])
    nv = pallas_layernorm(v, params["normv_w"], params["normv_b"])
    q_proj = pallas_linear(nq.reshape(B * Nq, C), params["ca_q_w"])     # (B*Nq, out_dim)
    kv_w = jnp.concatenate([params["ca_k_w"], params["ca_v_w"]], axis=1)
    kv_proj = pallas_linear(nv.reshape(B * Nk, Cv), kv_w)               # (B*Nk, 2*out_dim)
    ctx2, weights = pallas_cross_attention(
        q_proj.reshape(B, Nq, out_dim), kv_proj.reshape(B, Nk, 2 * out_dim),
        num_heads, scale_cross)
    q = pallas_linear(ctx2.reshape(B * Nq, out_dim), params["ca_proj_w"],
                      bias=params["ca_proj_b"],
                      residual=q.reshape(B * Nq, out_dim)).reshape(B, Nq, out_dim)

    # ---- 3) MLP branch: q = q + fc2(GELU(fc1(norm2(q)))) ----
    n2 = pallas_layernorm(q, params["norm2_w"], params["norm2_b"])
    h = pallas_linear(n2.reshape(B * Nq, out_dim), params["fc1_w"],
                      bias=params["fc1_b"], activation="gelu")
    q = pallas_linear(h, params["fc2_w"], bias=params["fc2_b"],
                      residual=q.reshape(B * Nq, out_dim)).reshape(B, Nq, out_dim)
    return q, weights


# ---------------------------------------------------------------------------
# Pure-JAX reference (mirrors the PyTorch module)
# ---------------------------------------------------------------------------
def reference_forward(q, v, params, num_heads, eps=_LN_EPS):
    def ln(x, w, b):
        mu = jnp.mean(x, axis=-1, keepdims=True)
        var = jnp.mean(jnp.square(x - mu), axis=-1, keepdims=True)
        return (x - mu) * lax.rsqrt(var + eps) * w + b

    def self_attention(x):
        B, N, C = x.shape
        hd = C // num_heads
        scale = hd ** -0.5
        qkv = (x @ params["sa_qkv_w"]).reshape(B, N, 3, num_heads, hd)
        qkv = jnp.transpose(qkv, (2, 0, 3, 1, 4))
        qq, kk, vv = qkv[0], qkv[1], qkv[2]
        attn = jax.nn.softmax((qq @ jnp.swapaxes(kk, -1, -2)) * scale, axis=-1)
        ctx = jnp.transpose(attn @ vv, (0, 2, 1, 3)).reshape(B, N, C)
        return ctx @ params["sa_proj_w"] + params["sa_proj_b"]

    def cross_attention(xq, xv):
        B, Nq, _ = xq.shape
        Nk = xv.shape[1]
        C = params["ca_q_w"].shape[1]
        hd = C // num_heads
        scale = hd ** -0.5
        qq = (xq @ params["ca_q_w"]).reshape(B, Nq, num_heads, hd).transpose(0, 2, 1, 3)
        kk = (xv @ params["ca_k_w"]).reshape(B, Nk, num_heads, hd).transpose(0, 2, 1, 3)
        vv = (xv @ params["ca_v_w"]).reshape(B, Nk, num_heads, hd).transpose(0, 2, 1, 3)
        attn = jax.nn.softmax((qq @ jnp.swapaxes(kk, -1, -2)) * scale, axis=-1)
        ctx = jnp.transpose(attn @ vv, (0, 2, 1, 3)).reshape(B, Nq, C)
        return ctx @ params["ca_proj_w"] + params["ca_proj_b"], attn

    q = q + self_attention(ln(q, params["norm1_w"], params["norm1_b"]))
    q2, weights = cross_attention(ln(q, params["normq_w"], params["normq_b"]),
                                  ln(v, params["normv_w"], params["normv_b"]))
    q = q + q2
    h = jax.nn.gelu(
        ln(q, params["norm2_w"], params["norm2_b"]) @ params["fc1_w"] + params["fc1_b"],
        approximate=False)
    q = q + (h @ params["fc2_w"] + params["fc2_b"])
    return q, weights


# ---------------------------------------------------------------------------
# Demo / correctness check
# ---------------------------------------------------------------------------
if __name__ == "__main__":
    B, Nq, Nk = 2, 16, 8
    dim, out_dim, num_heads = 64, 64, 4
    mlp_hidden = int(dim * 4.0)

    key = jax.random.PRNGKey(0)
    ks = jax.random.split(key, 22)

    def nrm(k, shape, s=0.05):
        return jax.random.normal(k, shape, dtype=jnp.float32) * s

    q_in = jax.random.normal(ks[0], (B, Nq, dim), dtype=jnp.float32)
    v_in = jax.random.normal(ks[1], (B, Nk, dim), dtype=jnp.float32)

    params = dict(
        norm1_w=1.0 + nrm(ks[2], (dim,), 0.1), norm1_b=nrm(ks[3], (dim,), 0.1),
        sa_qkv_w=nrm(ks[4], (dim, 3 * dim)),
        sa_proj_w=nrm(ks[5], (dim, dim)), sa_proj_b=nrm(ks[6], (dim,)),
        normq_w=1.0 + nrm(ks[7], (dim,), 0.1), normq_b=nrm(ks[8], (dim,), 0.1),
        normv_w=1.0 + nrm(ks[9], (dim,), 0.1), normv_b=nrm(ks[10], (dim,), 0.1),
        ca_q_w=nrm(ks[11], (dim, out_dim)),
        ca_k_w=nrm(ks[12], (dim, out_dim)),
        ca_v_w=nrm(ks[13], (dim, out_dim)),
        ca_proj_w=nrm(ks[14], (out_dim, out_dim)), ca_proj_b=nrm(ks[15], (out_dim,)),
        norm2_w=1.0 + nrm(ks[16], (dim,), 0.1), norm2_b=nrm(ks[17], (dim,), 0.1),
        fc1_w=nrm(ks[18], (dim, mlp_hidden)), fc1_b=nrm(ks[19], (mlp_hidden,)),
        fc2_w=nrm(ks[20], (mlp_hidden, dim)), fc2_b=nrm(ks[21], (dim,)),
    )

    out, weights = skip_cross_attention_forward(q_in, v_in, params, num_heads)
    jax.block_until_ready((out, weights))

    out_ref, weights_ref = reference_forward(q_in, v_in, params, num_heads)

    assert out.shape == (B, Nq, dim)
    assert weights.shape == (B, num_heads, Nq, Nk)
    assert jnp.allclose(out, out_ref, rtol=2e-3, atol=2e-3), (
        float(jnp.max(jnp.abs(out - out_ref))))
    assert jnp.allclose(weights, weights_ref, rtol=2e-3, atol=2e-3), (
        float(jnp.max(jnp.abs(weights - weights_ref))))

    print("KERNEL_OK")
</pallas_src>

<mosaic_0001>
module attributes {stable_mosaic.version = 11 : i64} {
  func.func @_layernorm_kernel(%arg0: i32, %arg1: memref<32x64xf32, #tpu.memory_space<vmem>>, %arg2: memref<1x64xf32, #tpu.memory_space<vmem>>, %arg3: memref<1x64xf32, #tpu.memory_space<vmem>>, %arg4: memref<32x64xf32, #tpu.memory_space<vmem>>) attributes {dimension_semantics = [#tpu.dimension_semantics<parallel>], iteration_bounds = array<i64: 1>, scalar_prefetch = 0 : i64, scratch_operands = 0 : i64, tpu.core_type = #tpu.core_type<tc>, window_params = [{transform_indices = @transform_0, window_bounds = array<i64: 32, 64>}, {pipeline_mode = #tpu.pipeline_mode<synchronous>, transform_indices = @transform_1, window_bounds = array<i64: 1, 64>}, {pipeline_mode = #tpu.pipeline_mode<synchronous>, transform_indices = @transform_2, window_bounds = array<i64: 1, 64>}, {transform_indices = @transform_3, window_bounds = array<i64: 32, 64>}]} {
    %c0 = arith.constant 0 : index
    %c0_0 = arith.constant 0 : index
    %0 = vector.load %arg1[%c0, %c0_0] : memref<32x64xf32, #tpu.memory_space<vmem>>, vector<32x64xf32>
    %cst = arith.constant dense<0.000000e+00> : vector<32xf32>
    %1 = vector.multi_reduction <add>, %0, %cst [1] : vector<32x64xf32> to vector<32xf32>
    %2 = vector.shape_cast %1 : vector<32xf32> to vector<32x1xf32>
    %cst_1 = arith.constant 6.400000e+01 : f32
    %3 = vector.broadcast %cst_1 : f32 to vector<32x1xf32>
    %4 = arith.divf %2, %3 : vector<32x1xf32>
    %5 = vector.broadcast %4 : vector<32x1xf32> to vector<32x64xf32>
    %6 = arith.subf %0, %5 : vector<32x64xf32>
    %7 = arith.mulf %6, %6 : vector<32x64xf32>
    %cst_2 = arith.constant dense<0.000000e+00> : vector<32xf32>
    %8 = vector.multi_reduction <add>, %7, %cst_2 [1] : vector<32x64xf32> to vector<32xf32>
    %9 = vector.shape_cast %8 : vector<32xf32> to vector<32x1xf32>
    %cst_3 = arith.constant 6.400000e+01 : f32
    %10 = vector.broadcast %cst_3 : f32 to vector<32x1xf32>
    %11 = arith.divf %9, %10 : vector<32x1xf32>
    %cst_4 = arith.constant 9.99999974E-6 : f32
    %12 = vector.broadcast %cst_4 : f32 to vector<32x1xf32>
    %13 = arith.addf %11, %12 : vector<32x1xf32>
    %14 = math.rsqrt %13 : vector<32x1xf32>
    %15 = vector.broadcast %14 : vector<32x1xf32> to vector<32x64xf32>
    %16 = arith.mulf %6, %15 : vector<32x64xf32>
    %c0_5 = arith.constant 0 : index
    %c0_6 = arith.constant 0 : index
    %17 = vector.load %arg2[%c0_5, %c0_6] : memref<1x64xf32, #tpu.memory_space<vmem>>, vector<1x64xf32>
    %18 = vector.broadcast %17 : vector<1x64xf32> to vector<32x64xf32>
    %19 = arith.mulf %16, %18 : vector<32x64xf32>
    %c0_7 = arith.constant 0 : index
    %c0_8 = arith.constant 0 : index
    %20 = vector.load %arg3[%c0_7, %c0_8] : memref<1x64xf32, #tpu.memory_space<vmem>>, vector<1x64xf32>
    %21 = vector.broadcast %20 : vector<1x64xf32> to vector<32x64xf32>
    %22 = arith.addf %19, %21 : vector<32x64xf32>
    %c0_9 = arith.constant 0 : index
    %c0_10 = arith.constant 0 : index
    %23 = vector.load %arg4[%c0_9, %c0_10] : memref<32x64xf32, #tpu.memory_space<vmem>>, vector<32x64xf32>
    tpu.vector_store %arg4[%c0_9, %c0_10], %22 {strides = array<i32>} : memref<32x64xf32, #tpu.memory_space<vmem>>, vector<32x64xf32>,
    return
  }
  func.func @transform_0(%arg0: i32) -> (i32, i32) {
    %c0_i32 = arith.constant 0 : i32
    %c0_i32_0 = arith.constant 0 : i32
    return %arg0, %c0_i32 : i32, i32
  }
  func.func @transform_1(%arg0: i32) -> (i32, i32) {
    %c0_i32 = arith.constant 0 : i32
    %c0_i32_0 = arith.constant 0 : i32
    %c0_i32_1 = arith.constant 0 : i32
    return %c0_i32, %c0_i32_0 : i32, i32
  }
  func.func @transform_2(%arg0: i32) -> (i32, i32) {
    %c0_i32 = arith.constant 0 : i32
    %c0_i32_0 = arith.constant 0 : i32
    %c0_i32_1 = arith.constant 0 : i32
    return %c0_i32, %c0_i32_0 : i32, i32
  }
  func.func @transform_3(%arg0: i32) -> (i32, i32) {
    %c0_i32 = arith.constant 0 : i32
    %c0_i32_0 = arith.constant 0 : i32
    return %arg0, %c0_i32 : i32, i32
  }
}

</mosaic_0001>

<llo_original>
// kernel: tpu_custom_call.1
$region0: #{tpu_custom_call.1}
  #allocation0 [shape = 'u32[]', space=smem, size = 0x4, offset = 0x4, fixed_abs, tag = 'smem constant byte address 0x4 - core index']
  #allocation1 [shape = 'u32[144,128]{1,0:T(1,128)}', space=vmem, size = 0x12000, scoped, tag = 'internal scratch']
  %s0 = inlined_call_operand.hbm [shape: f32[32,64], index: 0, kind: input, shape index: {}]
  %s1 = inlined_call_operand.vmem [shape: f32[1,64], index: 1, kind: input, shape index: {}]
  %s2 = inlined_call_operand.vmem [shape: f32[1,64], index: 2, kind: input, shape index: {}]
  %s3 = inlined_call_operand.hbm [shape: f32[32,64], index: 3, kind: output, shape index: {}]
  %s4 = sld [smem:[#allocation0]]
  $region26: #{tpu_custom_call.1} parent=0
    _
  %s6 = ssub.s32 1, %s4
  %s7 = scalar_select 0, %s6, %s4
  $region1: #{tpu_custom_call.1} parent=0
    #allocation2 [shape = 'u8[16384]{0}', space=vmem, size = 0x4000, scoped, tag = 'input window, operand 0, single buffered']
    #allocation3 [shape = 's32[1]{0}', space=sflag, size = 0x4, scoped, tag = 'scoped memory for tpu_custom_call.1']
    #allocation4 [shape = 's32[1]{0}', space=sflag, size = 0x4, scoped, tag = 'scoped memory for tpu_custom_call.1']
    #allocation5 [shape = 'u8[16384]{0}', space=vmem, size = 0x4000, scoped, tag = 'output window, operand 0, single buffered']
    %8 = vsyncpa [#allocation3], 0
    %9 = vsyncpa [#allocation4], 0
    // Predicated region
    $region2: #{tpu_custom_call.1} parent=1 // pred_check
      _
    $region3: #{tpu_custom_call.1} parent=1 // pred_check_branch
      %11 = sbr.rel (0) target = $region5
    $region4: #{tpu_custom_call.1} parent=1 // pred_region
      %s13 = ssub.s32 512, 512
      %14 = vsyncadd [#allocation3], %s13
      %s15 = sshll.u32 [#allocation2], 4
      %s16 = int_to_ptr.vmem [resolvable:$true] %s15
      %21 = dma.hbm_to_vmem [thread:$0]  %s0, 512, %s16, [#allocation3], 128, 128, 8
    $region5: #{tpu_custom_call.1} parent=1 // pred_fallthru
      _
    // Predicated region
    $region6: #{tpu_custom_call.1} parent=1 // pred_check
      _
    $region7: #{tpu_custom_call.1} parent=1 // pred_check_branch
      %23 = sbr.rel (0) target = $region9
    $region8: #{tpu_custom_call.1} parent=1 // pred_region
      _
    $region9: #{tpu_custom_call.1} parent=1 // pred_fallthru
      _
    // Predicated region
    $region10: #{tpu_custom_call.1} parent=1 // pred_check
      _
    $region11: #{tpu_custom_call.1} parent=1 // pred_check_branch
      %25 = sbr.rel (0) target = $region13
    $region12: #{tpu_custom_call.1} parent=1 // pred_region
      _
    $region13: #{tpu_custom_call.1} parent=1 // pred_fallthru
      _
    // Predicated region
    $region14: #{tpu_custom_call.1} parent=1 // pred_check
      _
    $region15: #{tpu_custom_call.1} parent=1 // pred_check_branch
      %27 = sbr.rel (0) target = $region17
    $region16: #{tpu_custom_call.1} parent=1 // pred_region
      %28 = dma.done [#allocation3], 512
    $region17: #{tpu_custom_call.1} parent=1 // pred_fallthru
      _
    %v29 = vld [vmem:[#allocation2] sm:$0xff]
    %v30 = vld [vmem:[#allocation2 + $0x8] sm:$0xff]
    %v31 = vld [vmem:[#allocation2 + $0x10] sm:$0xff]
    %v32 = vld [vmem:[#allocation2 + $0x18] sm:$0xff]
    %vm33 = vcmask 523264
    %v34 = vsel %vm33, %v29, 0.0
    %35 = vadd.xlane.f32.xlu0 %v34
    %v36 = vpop.xlane.xlu0 %35
    %v37 = vsel %vm33, %v30, 0.0
    %38 = vadd.xlane.f32.xlu0 %v37
    %v39 = vpop.xlane.xlu0 %38
    %v40 = vsel %vm33, %v31, 0.0
    %41 = vadd.xlane.f32.xlu0 %v40
    %v42 = vpop.xlane.xlu0 %41
    %v43 = vsel %vm33, %v32, 0.0
    %44 = vadd.xlane.f32.xlu0 %v43
    %v45 = vpop.xlane.xlu0 %44
    %v46 = vrcp.pop 64.0
    %v47 = vmul.f32 %v36, %v46
    %v48 = vmul.f32 %v39, %v46
    %v49 = vmul.f32 %v42, %v46
    %v50 = vmul.f32 %v45, %v46
    %v51 = vsub.f32 %v29, %v47
    %v52 = vsub.f32 %v30, %v48
    %v53 = vsub.f32 %v31, %v49
    %v54 = vsub.f32 %v32, %v50
    %v55 = vmul.f32 %v51, %v51
    %v56 = vmul.f32 %v52, %v52
    %v57 = vmul.f32 %v53, %v53
    %v58 = vmul.f32 %v54, %v54
    %v59 = vsel %vm33, %v55, 0.0
    %60 = vadd.xlane.f32.xlu0 %v59
    %v61 = vpop.xlane.xlu0 %60
    %v62 = vsel %vm33, %v56, 0.0
    %63 = vadd.xlane.f32.xlu0 %v62
    %v64 = vpop.xlane.xlu0 %63
    %v65 = vsel %vm33, %v57, 0.0
    %66 = vadd.xlane.f32.xlu0 %v65
    %v67 = vpop.xlane.xlu0 %66
    %v68 = vsel %vm33, %v58, 0.0
    %69 = vadd.xlane.f32.xlu0 %v68
    %v70 = vpop.xlane.xlu0 %69
    %v71 = vmul.f32 %v61, %v46
    %v72 = vmul.f32 %v64, %v46
    %v73 = vmul.f32 %v67, %v46
    %v74 = vmul.f32 %v70, %v46
    %v75 = vadd.f32 %v71, 1e-05
    %v76 = vadd.f32 %v72, 1e-05
    %v77 = vadd.f32 %v73, 1e-05
    %v78 = vadd.f32 %v74, 1e-05
    %v79 = vrsqrt.pop %v75
    %v80 = vrsqrt.pop %v76
    %v81 = vrsqrt.pop %v77
    %v82 = vrsqrt.pop %v78
    %v83 = vmul.f32 %v51, %v79
    %v84 = vmul.f32 %v52, %v80
    %v85 = vmul.f32 %v53, %v81
    %v86 = vmul.f32 %v54, %v82
    %v87 = vld [vmem:[%s1] sm:$0x1]
    %v89 = vlaneseq
    %v90 = vshrl.u32 %v89, 7
    %v91 = vsub.s32 0, %v90
    %v92 = vrot.slane %v87, %v91
    %v94 = vmul.f32 %v83, %v92
    %v95 = vmul.f32 %v84, %v92
    %v96 = vmul.f32 %v85, %v92
    %v97 = vmul.f32 %v86, %v92
    %v98 = vld [vmem:[%s2] sm:$0x1]
    %v100 = vlaneseq
    %v101 = vshrl.u32 %v100, 7
    %v102 = vsub.s32 0, %v101
    %v103 = vrot.slane %v98, %v102
    %v105 = vadd.f32 %v94, %v103
    %v106 = vadd.f32 %v95, %v103
    %v107 = vadd.f32 %v96, %v103
    %v108 = vadd.f32 %v97, %v103
    %109 = vst.msk [vmem:[#allocation5] sm:$0xff] %vm33, %v105
    %110 = vst.msk [vmem:[#allocation5 + $0x8] sm:$0xff] %vm33, %v106
    %111 = vst.msk [vmem:[#allocation5 + $0x10] sm:$0xff] %vm33, %v107
    %112 = vst.msk [vmem:[#allocation5 + $0x18] sm:$0xff] %vm33, %v108
    // Predicated region
    $region18: #{tpu_custom_call.1} parent=1 // pred_check
      _
    $region19: #{tpu_custom_call.1} parent=1 // pred_check_branch
      %114 = sbr.rel (0) target = $region21
    $region20: #{tpu_custom_call.1} parent=1 // pred_region
      %s116 = ssub.s32 512, 512
      %117 = vsyncadd [#allocation4], %s116
      %s118 = sshll.u32 [#allocation5], 4
      %s119 = int_to_ptr.vmem [resolvable:$true] %s118
      %124 = dma.vmem_to_hbm [thread:$0]  %s119, 512, %s3, [#allocation4], 128, 128, 8
    $region21: #{tpu_custom_call.1} parent=1 // pred_fallthru
      _
    // Predicated region
    $region22: #{tpu_custom_call.1} parent=1 // pred_check
      _
    $region23: #{tpu_custom_call.1} parent=1 // pred_check_branch
      %126 = sbr.rel (0) target = $region25
    $region24: #{tpu_custom_call.1} parent=1 // pred_region
      %127 = dma.done [#allocation4], 512
    $region25: #{tpu_custom_call.1} parent=1 // pred_fallthru
      _
    %128 = vsyncpa [#allocation3], 1
    %129 = vsyncpa [#allocation4], 1

</llo_original>
